<compile_context>
chip_gen: v7x
topology: tpu7x:2x2x1
jax: 0.10.0
libtpu: 0.0.40
codegen_flags: <defaults>
</compile_context>

<pallas_src>
import functools

import jax
import jax.numpy as jnp
from jax.experimental import pallas as pl
from jax.experimental.pallas import tpu as pltpu

F32 = jnp.float32
LANE = 128


def _round_up(n, m):
    return ((n + m - 1) // m) * m


def _spiral_kernel(
    # inputs
    x_ref,
    we1_ref, be1_ref, we2_ref, be2_ref,
    wheads_ref, wh1_ref, wprior_ref,
    wd1_ref, bd1_ref, wd2_ref, bd2_ref, wdec_ref,
    # outputs
    heads_ref, qz_ref, prior_ref, dec_ref,
    *, x_size, w_size, K,
):
    x = x_ref[...]

    # ---------------- encoder: Linear (BN folded) -> ReLU (x2) ----------------
    h = jnp.dot(x, we1_ref[...], preferred_element_type=F32) + be1_ref[...]
    h = jnp.maximum(h, 0.0)
    h = jnp.dot(h, we2_ref[...], preferred_element_type=F32) + be2_ref[...]
    h = jnp.maximum(h, 0.0)

    # ---------------- fused encoder heads ----------------
    # column layout: [mu_x | logvar_x | mu_w | logvar_w | qz_logits | zero pad]
    heads = jnp.dot(h, wheads_ref[...], preferred_element_type=F32)
    heads_ref[...] = heads

    X, W = x_size, w_size
    logits = heads[:, 2 * X + 2 * W: 2 * X + 2 * W + K]   # only the K valid lanes
    m = jnp.max(logits, axis=1, keepdims=True)
    e = jnp.exp(logits - m)
    qz_ref[...] = e * pl.reciprocal(jnp.sum(e, axis=1, keepdims=True), approx=True)

    # reparameterize in eval mode: z = mu
    mu_x = heads[:, :X]                       # x_sample
    mu_w = heads[:, 2 * X: 2 * X + W]         # w_sample

    # ---------------- priorGenerator (all K components in one matmul) ----------------
    hp = jnp.tanh(jnp.dot(mu_w, wh1_ref[...], preferred_element_type=F32))
    prior_ref[...] = jnp.dot(hp, wprior_ref[...], preferred_element_type=F32)

    # ---------------- decoder ----------------
    hd = jnp.dot(mu_x, wd1_ref[...], preferred_element_type=F32) + bd1_ref[...]
    hd = jnp.maximum(hd, 0.0)
    hd = jnp.dot(hd, wd2_ref[...], preferred_element_type=F32) + bd2_ref[...]
    hd = jnp.maximum(hd, 0.0)
    dec_ref[...] = jnp.dot(hd, wdec_ref[...], preferred_element_type=F32)


def spiral_forward(params, x):
    B, X = x.shape
    H = params["w_enc1"].shape[1]
    W = params["w_mu_w"].shape[1]
    K = params["w_mu_px"].shape[0]

    Hp = _round_up(H, LANE)
    HEADS = _round_up(2 * X + 2 * W + K, LANE)
    PRIOR = _round_up(2 * K * X, LANE)
    DEC = _round_up(2 * X, LANE)

    def pad_cols(w, n):
        return jnp.pad(w, ((0, 0), (0, n - w.shape[1])))

    def pad_rows(w, n):
        return jnp.pad(w, ((0, n - w.shape[0]), (0, 0)))

    # --- fold eval-mode BN into the encoder Linear weights, pad H -> Hp ---
    we1 = pad_cols(params["w_enc1"] * params["bn1_scale"], Hp)
    be1 = pad_cols(params["bn1_shift"], Hp)
    we2 = pad_rows(pad_cols(params["w_enc2"] * params["bn2_scale"], Hp), Hp)
    be2 = pad_cols(params["bn2_shift"], Hp)

    # --- fused encoder heads (H, 2X+2W+K) -> padded (Hp, HEADS) ---
    heads_w = jnp.concatenate(
        [params["w_mu_x"], params["w_logvar_x"],
         params["w_mu_w"], params["w_logvar_w"], params["w_qz"]], axis=1)
    wheads = pad_rows(pad_cols(heads_w, HEADS), Hp)

    wh1 = pad_cols(params["w_h1"], Hp)

    # --- fused prior weights: (K, H, X) -> (H, K*X), mu then logvar ---
    wmupx = jnp.transpose(params["w_mu_px"], (1, 0, 2)).reshape(H, K * X)
    wlvpx = jnp.transpose(params["w_logvar_px"], (1, 0, 2)).reshape(H, K * X)
    wprior = pad_rows(pad_cols(jnp.concatenate([wmupx, wlvpx], axis=1), PRIOR), Hp)

    # --- decoder ---
    wd1 = pad_cols(params["w_d1"], Hp)
    bd1 = pad_cols(params["b_d1"], Hp)
    wd2 = pad_rows(pad_cols(params["w_d2"], Hp), Hp)
    bd2 = pad_cols(params["b_d2"], Hp)
    wdec = pad_rows(pad_cols(
        jnp.concatenate([params["w_mu_y"], params["w_logvar_y"]], axis=1), DEC), Hp)

    weights = (we1, be1, we2, be2, wheads, wh1, wprior, wd1, bd1, wd2, bd2, wdec)

    # --- batch tiling (grid over batch; weights stay resident) ---
    tile_B = min(_round_up(max(B, 1), 8), 512)
    B_pad = _round_up(B, tile_B)
    x_in = jnp.pad(x, ((0, B_pad - B), (0, 0))) if B_pad != B else x
    nb = B_pad // tile_B

    def row_spec(cols):
        return pl.BlockSpec((tile_B, cols), lambda i: (i, 0))

    def full_spec(arr):
        nd = arr.ndim
        return pl.BlockSpec(arr.shape, lambda i, _nd=nd: (0,) * _nd)

    flops = 2 * B_pad * (X * Hp + Hp * Hp + Hp * HEADS + W * Hp + Hp * PRIOR
                         + X * Hp + Hp * Hp + Hp * DEC)
    transcendentals = B_pad * (K + Hp)
    bytes_accessed = 4 * (x_in.size + sum(int(w.size) for w in weights)
                          + B_pad * (HEADS + K + PRIOR + DEC))

    outs = pl.pallas_call(
        functools.partial(_spiral_kernel, x_size=X, w_size=W, K=K),
        out_shape=(
            jax.ShapeDtypeStruct((B_pad, HEADS), F32),   # head slab
            jax.ShapeDtypeStruct((B_pad, K), F32),       # qz
            jax.ShapeDtypeStruct((B_pad, PRIOR), F32),   # [mu_px | logvar_px] slab
            jax.ShapeDtypeStruct((B_pad, DEC), F32),     # [mu_y | logvar_y] slab
        ),
        grid=(nb,),
        in_specs=[row_spec(X)] + [full_spec(w) for w in weights],
        out_specs=(row_spec(HEADS), row_spec(K), row_spec(PRIOR), row_spec(DEC)),
        compiler_params=pltpu.CompilerParams(dimension_semantics=("parallel",)),
        cost_estimate=pl.CostEstimate(flops=flops,
                                      transcendentals=transcendentals,
                                      bytes_accessed=bytes_accessed),
    )(x_in, *weights)

    heads, qz, prior, dec = (o[:B] for o in outs)

    mu_x = heads[:, :X]
    logvar_x = heads[:, X:2 * X]
    mu_w = heads[:, 2 * X:2 * X + W]
    logvar_w = heads[:, 2 * X + W:2 * X + 2 * W]
    # (B, K*X) -> (B, K, X) -> (B, X, K)  (layout plumbing only)
    mu_px = jnp.transpose(prior[:, :K * X].reshape(B, K, X), (0, 2, 1))
    logvar_px = jnp.transpose(prior[:, K * X:2 * K * X].reshape(B, K, X), (0, 2, 1))
    mu_y = dec[:, :X]
    logvar_y = dec[:, X:2 * X]
    x_sample = mu_x  # eval-mode reparameterize returns mu; no separate kernel output

    return (mu_x, logvar_x, mu_px, logvar_px, qz, (mu_y, logvar_y),
            mu_w, logvar_w, x_sample)


def init_params(key, x_size, w_size, K, H=100):
    """Deterministic synthetic init (PyTorch-style uniform fan-in bounds)."""
    keys = iter(jax.random.split(key, 32))

    def lin(fan_in, fan_out):
        bound = 1.0 / float(fan_in) ** 0.5
        # stored transposed: (in_features, out_features)
        return jax.random.uniform(next(keys), (fan_in, fan_out), F32, -bound, bound)

    def bias(fan_in, fan_out):
        bound = 1.0 / float(fan_in) ** 0.5
        return jax.random.uniform(next(keys), (1, fan_out), F32, -bound, bound)

    eps = 1e-5
    # BatchNorm1d(100) eval-mode folded affine: gamma=1, beta=0, mean=0, var=1
    bn_scale = jnp.full((1, H), 1.0 / (1.0 + eps) ** 0.5, F32)
    bn_shift = jnp.zeros((1, H), F32)

    params = {
        "w_enc1": lin(x_size, H), "bn1_scale": bn_scale, "bn1_shift": bn_shift,
        "w_enc2": lin(H, H),      "bn2_scale": bn_scale, "bn2_shift": bn_shift,
        "w_mu_x": lin(H, x_size), "w_logvar_x": lin(H, x_size),
        "w_mu_w": lin(H, w_size), "w_logvar_w": lin(H, w_size),
        "w_qz": lin(H, K),
        "w_h1": lin(w_size, H),
        "w_mu_px": jnp.stack([lin(H, x_size) for _ in range(K)], axis=0),
        "w_logvar_px": jnp.stack([lin(H, x_size) for _ in range(K)], axis=0),
        "w_d1": lin(x_size, H), "b_d1": bias(x_size, H),
        "w_d2": lin(H, H),      "b_d2": bias(H, H),
        "w_mu_y": lin(H, x_size), "w_logvar_y": lin(H, x_size),
    }
    return params


def spiral_ref(params, x):
    """Pure-JAX reference for correctness checking (unfused, original layout)."""
    h = x @ params["w_enc1"]
    h = jnp.maximum(h * params["bn1_scale"] + params["bn1_shift"], 0.0)
    h = h @ params["w_enc2"]
    h = jnp.maximum(h * params["bn2_scale"] + params["bn2_shift"], 0.0)
    qz = jax.nn.softmax(h @ params["w_qz"], axis=1)
    mu_x = h @ params["w_mu_x"]
    logvar_x = h @ params["w_logvar_x"]
    mu_w = h @ params["w_mu_w"]
    logvar_w = h @ params["w_logvar_w"]
    w_sample, x_sample = mu_w, mu_x
    hp = jnp.tanh(w_sample @ params["w_h1"])
    K = params["w_mu_px"].shape[0]
    mu_px = jnp.stack([hp @ params["w_mu_px"][i] for i in range(K)], axis=-1)
    logvar_px = jnp.stack([hp @ params["w_logvar_px"][i] for i in range(K)], axis=-1)
    hd = jnp.maximum(x_sample @ params["w_d1"] + params["b_d1"], 0.0)
    hd = jnp.maximum(hd @ params["w_d2"] + params["b_d2"], 0.0)
    mu_y = hd @ params["w_mu_y"]
    logvar_y = hd @ params["w_logvar_y"]
    return (mu_x, logvar_x, mu_px, logvar_px, qz, (mu_y, logvar_y),
            mu_w, logvar_w, x_sample)


if __name__ == "__main__":
    # small shapes consistent with the module: x_size, w_size, K are args fields
    B, X_SIZE, W_SIZE, K = 8, 32, 8, 4
    key = jax.random.PRNGKey(0)
    pkey, xkey = jax.random.split(key)
    params = init_params(pkey, X_SIZE, W_SIZE, K)
    x = jax.random.normal(xkey, (B, X_SIZE), F32)

    out = spiral_forward(params, x)
    jax.block_until_ready(out)

    ref = spiral_ref(params, x)
    flat_out = jax.tree_util.tree_leaves(out)
    flat_ref = jax.tree_util.tree_leaves(ref)
    assert len(flat_out) == len(flat_ref)
    for a, b in zip(flat_out, flat_ref):
        assert a.shape == b.shape and a.dtype == b.dtype
        # tolerance covers the EUP approximate reciprocal used in the softmax
        assert jnp.allclose(a, b, atol=1e-3, rtol=1e-3), "mismatch vs reference"

    print("KERNEL_OK")
</pallas_src>

<mosaic_0001>
module attributes {stable_mosaic.version = 11 : i64} {
  func.func @_spiral_kernel(%arg0: i32, %arg1: memref<8x32xf32, #tpu.memory_space<vmem>>, %arg2: memref<32x128xf32, #tpu.memory_space<vmem>>, %arg3: memref<1x128xf32, #tpu.memory_space<vmem>>, %arg4: memref<128x128xf32, #tpu.memory_space<vmem>>, %arg5: memref<1x128xf32, #tpu.memory_space<vmem>>, %arg6: memref<128x128xf32, #tpu.memory_space<vmem>>, %arg7: memref<8x128xf32, #tpu.memory_space<vmem>>, %arg8: memref<128x256xf32, #tpu.memory_space<vmem>>, %arg9: memref<32x128xf32, #tpu.memory_space<vmem>>, %arg10: memref<1x128xf32, #tpu.memory_space<vmem>>, %arg11: memref<128x128xf32, #tpu.memory_space<vmem>>, %arg12: memref<1x128xf32, #tpu.memory_space<vmem>>, %arg13: memref<128x128xf32, #tpu.memory_space<vmem>>, %arg14: memref<8x128xf32, #tpu.memory_space<vmem>>, %arg15: memref<8x4xf32, #tpu.memory_space<vmem>>, %arg16: memref<8x256xf32, #tpu.memory_space<vmem>>, %arg17: memref<8x128xf32, #tpu.memory_space<vmem>>) attributes {dimension_semantics = [#tpu.dimension_semantics<parallel>], iteration_bounds = array<i64: 1>, scalar_prefetch = 0 : i64, scratch_operands = 0 : i64, tpu.core_type = #tpu.core_type<tc>, window_params = [{transform_indices = @transform_0, window_bounds = array<i64: 8, 32>}, {pipeline_mode = #tpu.pipeline_mode<synchronous>, transform_indices = @transform_1, window_bounds = array<i64: 32, 128>}, {pipeline_mode = #tpu.pipeline_mode<synchronous>, transform_indices = @transform_2, window_bounds = array<i64: 1, 128>}, {pipeline_mode = #tpu.pipeline_mode<synchronous>, transform_indices = @transform_3, window_bounds = array<i64: 128, 128>}, {pipeline_mode = #tpu.pipeline_mode<synchronous>, transform_indices = @transform_4, window_bounds = array<i64: 1, 128>}, {pipeline_mode = #tpu.pipeline_mode<synchronous>, transform_indices = @transform_5, window_bounds = array<i64: 128, 128>}, {pipeline_mode = #tpu.pipeline_mode<synchronous>, transform_indices = @transform_6, window_bounds = array<i64: 8, 128>}, {pipeline_mode = #tpu.pipeline_mode<synchronous>, transform_indices = @transform_7, window_bounds = array<i64: 128, 256>}, {pipeline_mode = #tpu.pipeline_mode<synchronous>, transform_indices = @transform_8, window_bounds = array<i64: 32, 128>}, {pipeline_mode = #tpu.pipeline_mode<synchronous>, transform_indices = @transform_9, window_bounds = array<i64: 1, 128>}, {pipeline_mode = #tpu.pipeline_mode<synchronous>, transform_indices = @transform_10, window_bounds = array<i64: 128, 128>}, {pipeline_mode = #tpu.pipeline_mode<synchronous>, transform_indices = @transform_11, window_bounds = array<i64: 1, 128>}, {pipeline_mode = #tpu.pipeline_mode<synchronous>, transform_indices = @transform_12, window_bounds = array<i64: 128, 128>}, {transform_indices = @transform_13, window_bounds = array<i64: 8, 128>}, {transform_indices = @transform_14, window_bounds = array<i64: 8, 4>}, {transform_indices = @transform_15, window_bounds = array<i64: 8, 256>}, {transform_indices = @transform_16, window_bounds = array<i64: 8, 128>}]} {
    %c0 = arith.constant 0 : index
    %c0_0 = arith.constant 0 : index
    %0 = vector.load %arg1[%c0, %c0_0] : memref<8x32xf32, #tpu.memory_space<vmem>>, vector<8x32xf32>
    %c0_1 = arith.constant 0 : index
    %c0_2 = arith.constant 0 : index
    %1 = vector.load %arg2[%c0_1, %c0_2] : memref<32x128xf32, #tpu.memory_space<vmem>>, vector<32x128xf32>
    %cst = arith.constant dense<0.000000e+00> : vector<8x128xf32>
    %2 = tpu.matmul %0, %1, %cst {dimension_numbers = #tpu.dot_dimension_numbers<[1], [0], [0], [1], [0, 0, 1, 1], [], []>} : vector<8x32xf32>, vector<32x128xf32>, vector<8x128xf32> -> vector<8x128xf32>
    %c0_3 = arith.constant 0 : index
    %c0_4 = arith.constant 0 : index
    %3 = vector.load %arg3[%c0_3, %c0_4] : memref<1x128xf32, #tpu.memory_space<vmem>>, vector<1x128xf32>
    %4 = vector.broadcast %3 : vector<1x128xf32> to vector<8x128xf32>
    %5 = arith.addf %2, %4 : vector<8x128xf32>
    %cst_5 = arith.constant 0.000000e+00 : f32
    %6 = vector.broadcast %cst_5 : f32 to vector<8x128xf32>
    %7 = arith.maximumf %5, %6 : vector<8x128xf32>
    %c0_6 = arith.constant 0 : index
    %c0_7 = arith.constant 0 : index
    %8 = vector.load %arg4[%c0_6, %c0_7] : memref<128x128xf32, #tpu.memory_space<vmem>>, vector<128x128xf32>
    %cst_8 = arith.constant dense<0.000000e+00> : vector<8x128xf32>
    %9 = tpu.matmul %7, %8, %cst_8 {dimension_numbers = #tpu.dot_dimension_numbers<[1], [0], [0], [1], [0, 0, 1, 1], [], []>} : vector<8x128xf32>, vector<128x128xf32>, vector<8x128xf32> -> vector<8x128xf32>
    %c0_9 = arith.constant 0 : index
    %c0_10 = arith.constant 0 : index
    %10 = vector.load %arg5[%c0_9, %c0_10] : memref<1x128xf32, #tpu.memory_space<vmem>>, vector<1x128xf32>
    %11 = vector.broadcast %10 : vector<1x128xf32> to vector<8x128xf32>
    %12 = arith.addf %9, %11 : vector<8x128xf32>
    %cst_11 = arith.constant 0.000000e+00 : f32
    %13 = vector.broadcast %cst_11 : f32 to vector<8x128xf32>
    %14 = arith.maximumf %12, %13 : vector<8x128xf32>
    %c0_12 = arith.constant 0 : index
    %c0_13 = arith.constant 0 : index
    %15 = vector.load %arg6[%c0_12, %c0_13] : memref<128x128xf32, #tpu.memory_space<vmem>>, vector<128x128xf32>
    %cst_14 = arith.constant dense<0.000000e+00> : vector<8x128xf32>
    %16 = tpu.matmul %14, %15, %cst_14 {dimension_numbers = #tpu.dot_dimension_numbers<[1], [0], [0], [1], [0, 0, 1, 1], [], []>} : vector<8x128xf32>, vector<128x128xf32>, vector<8x128xf32> -> vector<8x128xf32>
    %c0_15 = arith.constant 0 : index
    %c0_16 = arith.constant 0 : index
    %17 = vector.load %arg14[%c0_15, %c0_16] : memref<8x128xf32, #tpu.memory_space<vmem>>, vector<8x128xf32>
    tpu.vector_store %arg14[%c0_15, %c0_16], %16 {strides = array<i32>} : memref<8x128xf32, #tpu.memory_space<vmem>>, vector<8x128xf32>,
    %18 = vector.extract_strided_slice %16 {offsets = [0, 80], sizes = [8, 4], strides = [1, 1]} : vector<8x128xf32> to vector<8x4xf32>
    %cst_17 = arith.constant dense<0xFF800000> : vector<8xf32>
    %19 = vector.multi_reduction <maximumf>, %18, %cst_17 [1] : vector<8x4xf32> to vector<8xf32>
    %20 = vector.shape_cast %19 : vector<8xf32> to vector<8x1xf32>
    %21 = vector.broadcast %20 : vector<8x1xf32> to vector<8x4xf32>
    %22 = arith.subf %18, %21 : vector<8x4xf32>
    %23 = math.exp %22 : vector<8x4xf32>
    %cst_18 = arith.constant dense<0.000000e+00> : vector<8xf32>
    %24 = vector.multi_reduction <add>, %23, %cst_18 [1] : vector<8x4xf32> to vector<8xf32>
    %25 = vector.shape_cast %24 : vector<8xf32> to vector<8x1xf32>
    %26 = tpu.reciprocal %25 {approx = true} : vector<8x1xf32> -> vector<8x1xf32>
    %27 = vector.broadcast %26 : vector<8x1xf32> to vector<8x4xf32>
    %28 = arith.mulf %23, %27 : vector<8x4xf32>
    %c0_19 = arith.constant 0 : index
    %c0_20 = arith.constant 0 : index
    %29 = vector.load %arg15[%c0_19, %c0_20] : memref<8x4xf32, #tpu.memory_space<vmem>>, vector<8x4xf32>
    tpu.vector_store %arg15[%c0_19, %c0_20], %28 {strides = array<i32>} : memref<8x4xf32, #tpu.memory_space<vmem>>, vector<8x4xf32>,
    %30 = vector.extract_strided_slice %16 {offsets = [0, 0], sizes = [8, 32], strides = [1, 1]} : vector<8x128xf32> to vector<8x32xf32>
    %31 = vector.extract_strided_slice %16 {offsets = [0, 64], sizes = [8, 8], strides = [1, 1]} : vector<8x128xf32> to vector<8x8xf32>
    %c0_21 = arith.constant 0 : index
    %c0_22 = arith.constant 0 : index
    %32 = vector.load %arg7[%c0_21, %c0_22] : memref<8x128xf32, #tpu.memory_space<vmem>>, vector<8x128xf32>
    %cst_23 = arith.constant dense<0.000000e+00> : vector<8x128xf32>
    %33 = tpu.matmul %31, %32, %cst_23 {dimension_numbers = #tpu.dot_dimension_numbers<[1], [0], [0], [1], [0, 0, 1, 1], [], []>} : vector<8x8xf32>, vector<8x128xf32>, vector<8x128xf32> -> vector<8x128xf32>
    %34 = math.tanh %33 : vector<8x128xf32>
    %c0_24 = arith.constant 0 : index
    %c0_25 = arith.constant 0 : index
    %35 = vector.load %arg8[%c0_24, %c0_25] : memref<128x256xf32, #tpu.memory_space<vmem>>, vector<128x256xf32>
    %cst_26 = arith.constant dense<0.000000e+00> : vector<8x256xf32>
    %36 = tpu.matmul %34, %35, %cst_26 {dimension_numbers = #tpu.dot_dimension_numbers<[1], [0], [0], [1], [0, 0, 1, 1], [], []>} : vector<8x128xf32>, vector<128x256xf32>, vector<8x256xf32> -> vector<8x256xf32>
    %c0_27 = arith.constant 0 : index
    %c0_28 = arith.constant 0 : index
    %37 = vector.load %arg16[%c0_27, %c0_28] : memref<8x256xf32, #tpu.memory_space<vmem>>, vector<8x256xf32>
    tpu.vector_store %arg16[%c0_27, %c0_28], %36 {strides = array<i32>} : memref<8x256xf32, #tpu.memory_space<vmem>>, vector<8x256xf32>,
    %c0_29 = arith.constant 0 : index
    %c0_30 = arith.constant 0 : index
    %38 = vector.load %arg9[%c0_29, %c0_30] : memref<32x128xf32, #tpu.memory_space<vmem>>, vector<32x128xf32>
    %cst_31 = arith.constant dense<0.000000e+00> : vector<8x128xf32>
    %39 = tpu.matmul %30, %38, %cst_31 {dimension_numbers = #tpu.dot_dimension_numbers<[1], [0], [0], [1], [0, 0, 1, 1], [], []>} : vector<8x32xf32>, vector<32x128xf32>, vector<8x128xf32> -> vector<8x128xf32>
    %c0_32 = arith.constant 0 : index
    %c0_33 = arith.constant 0 : index
    %40 = vector.load %arg10[%c0_32, %c0_33] : memref<1x128xf32, #tpu.memory_space<vmem>>, vector<1x128xf32>
    %41 = vector.broadcast %40 : vector<1x128xf32> to vector<8x128xf32>
    %42 = arith.addf %39, %41 : vector<8x128xf32>
    %cst_34 = arith.constant 0.000000e+00 : f32
    %43 = vector.broadcast %cst_34 : f32 to vector<8x128xf32>
    %44 = arith.maximumf %42, %43 : vector<8x128xf32>
    %c0_35 = arith.constant 0 : index
    %c0_36 = arith.constant 0 : index
    %45 = vector.load %arg11[%c0_35, %c0_36] : memref<128x128xf32, #tpu.memory_space<vmem>>, vector<128x128xf32>
    %cst_37 = arith.constant dense<0.000000e+00> : vector<8x128xf32>
    %46 = tpu.matmul %44, %45, %cst_37 {dimension_numbers = #tpu.dot_dimension_numbers<[1], [0], [0], [1], [0, 0, 1, 1], [], []>} : vector<8x128xf32>, vector<128x128xf32>, vector<8x128xf32> -> vector<8x128xf32>
    %c0_38 = arith.constant 0 : index
    %c0_39 = arith.constant 0 : index
    %47 = vector.load %arg12[%c0_38, %c0_39] : memref<1x128xf32, #tpu.memory_space<vmem>>, vector<1x128xf32>
    %48 = vector.broadcast %47 : vector<1x128xf32> to vector<8x128xf32>
    %49 = arith.addf %46, %48 : vector<8x128xf32>
    %cst_40 = arith.constant 0.000000e+00 : f32
    %50 = vector.broadcast %cst_40 : f32 to vector<8x128xf32>
    %51 = arith.maximumf %49, %50 : vector<8x128xf32>
    %c0_41 = arith.constant 0 : index
    %c0_42 = arith.constant 0 : index
    %52 = vector.load %arg13[%c0_41, %c0_42] : memref<128x128xf32, #tpu.memory_space<vmem>>, vector<128x128xf32>
    %cst_43 = arith.constant dense<0.000000e+00> : vector<8x128xf32>
    %53 = tpu.matmul %51, %52, %cst_43 {dimension_numbers = #tpu.dot_dimension_numbers<[1], [0], [0], [1], [0, 0, 1, 1], [], []>} : vector<8x128xf32>, vector<128x128xf32>, vector<8x128xf32> -> vector<8x128xf32>
    %c0_44 = arith.constant 0 : index
    %c0_45 = arith.constant 0 : index
    %54 = vector.load %arg17[%c0_44, %c0_45] : memref<8x128xf32, #tpu.memory_space<vmem>>, vector<8x128xf32>
    tpu.vector_store %arg17[%c0_44, %c0_45], %53 {strides = array<i32>} : memref<8x128xf32, #tpu.memory_space<vmem>>, vector<8x128xf32>,
    return
  }
  func.func @transform_0(%arg0: i32) -> (i32, i32) {
    %c0_i32 = arith.constant 0 : i32
    %c0_i32_0 = arith.constant 0 : i32
    return %arg0, %c0_i32 : i32, i32
  }
  func.func @transform_1(%arg0: i32) -> (i32, i32) {
    %c0_i32 = arith.constant 0 : i32
    %c0_i32_0 = arith.constant 0 : i32
    %c0_i32_1 = arith.constant 0 : i32
    return %c0_i32, %c0_i32_0 : i32, i32
  }
  func.func @transform_2(%arg0: i32) -> (i32, i32) {
    %c0_i32 = arith.constant 0 : i32
    %c0_i32_0 = arith.constant 0 : i32
    %c0_i32_1 = arith.constant 0 : i32
    return %c0_i32, %c0_i32_0 : i32, i32
  }
  func.func @transform_3(%arg0: i32) -> (i32, i32) {
    %c0_i32 = arith.constant 0 : i32
    %c0_i32_0 = arith.constant 0 : i32
    %c0_i32_1 = arith.constant 0 : i32
    return %c0_i32, %c0_i32_0 : i32, i32
  }
  func.func @transform_4(%arg0: i32) -> (i32, i32) {
    %c0_i32 = arith.constant 0 : i32
    %c0_i32_0 = arith.constant 0 : i32
    %c0_i32_1 = arith.constant 0 : i32
    return %c0_i32, %c0_i32_0 : i32, i32
  }
  func.func @transform_5(%arg0: i32) -> (i32, i32) {
    %c0_i32 = arith.constant 0 : i32
    %c0_i32_0 = arith.constant 0 : i32
    %c0_i32_1 = arith.constant 0 : i32
    return %c0_i32, %c0_i32_0 : i32, i32
  }
  func.func @transform_6(%arg0: i32) -> (i32, i32) {
    %c0_i32 = arith.constant 0 : i32
    %c0_i32_0 = arith.constant 0 : i32
    %c0_i32_1 = arith.constant 0 : i32
    return %c0_i32, %c0_i32_0 : i32, i32
  }
  func.func @transform_7(%arg0: i32) -> (i32, i32) {
    %c0_i32 = arith.constant 0 : i32
    %c0_i32_0 = arith.constant 0 : i32
    %c0_i32_1 = arith.constant 0 : i32
    return %c0_i32, %c0_i32_0 : i32, i32
  }
  func.func @transform_8(%arg0: i32) -> (i32, i32) {
    %c0_i32 = arith.constant 0 : i32
    %c0_i32_0 = arith.constant 0 : i32
    %c0_i32_1 = arith.constant 0 : i32
    return %c0_i32, %c0_i32_0 : i32, i32
  }
  func.func @transform_9(%arg0: i32) -> (i32, i32) {
    %c0_i32 = arith.constant 0 : i32
    %c0_i32_0 = arith.constant 0 : i32
    %c0_i32_1 = arith.constant 0 : i32
    return %c0_i32, %c0_i32_0 : i32, i32
  }
  func.func @transform_10(%arg0: i32) -> (i32, i32) {
    %c0_i32 = arith.constant 0 : i32
    %c0_i32_0 = arith.constant 0 : i32
    %c0_i32_1 = arith.constant 0 : i32
    return %c0_i32, %c0_i32_0 : i32, i32
  }
  func.func @transform_11(%arg0: i32) -> (i32, i32) {
    %c0_i32 = arith.constant 0 : i32
    %c0_i32_0 = arith.constant 0 : i32
    %c0_i32_1 = arith.constant 0 : i32
    return %c0_i32, %c0_i32_0 : i32, i32
  }
  func.func @transform_12(%arg0: i32) -> (i32, i32) {
    %c0_i32 = arith.constant 0 : i32
    %c0_i32_0 = arith.constant 0 : i32
    %c0_i32_1 = arith.constant 0 : i32
    return %c0_i32, %c0_i32_0 : i32, i32
  }
  func.func @transform_13(%arg0: i32) -> (i32, i32) {
    %c0_i32 = arith.constant 0 : i32
    %c0_i32_0 = arith.constant 0 : i32
    return %arg0, %c0_i32 : i32, i32
  }
  func.func @transform_14(%arg0: i32) -> (i32, i32) {
    %c0_i32 = arith.constant 0 : i32
    %c0_i32_0 = arith.constant 0 : i32
    return %arg0, %c0_i32 : i32, i32
  }
  func.func @transform_15(%arg0: i32) -> (i32, i32) {
    %c0_i32 = arith.constant 0 : i32
    %c0_i32_0 = arith.constant 0 : i32
    return %arg0, %c0_i32 : i32, i32
  }
  func.func @transform_16(%arg0: i32) -> (i32, i32) {
    %c0_i32 = arith.constant 0 : i32
    %c0_i32_0 = arith.constant 0 : i32
    return %arg0, %c0_i32 : i32, i32
  }
}

</mosaic_0001>

<llo_original>
// kernel: tpu_custom_call.1
$region0: #{tpu_custom_call.1}
  #allocation0 [shape = 'u32[]', space=smem, size = 0x4, offset = 0x4, fixed_abs, tag = 'smem constant byte address 0x4 - core index']
  #allocation1 [shape = 'u32[144,128]{1,0:T(1,128)}', space=vmem, size = 0x12000, scoped, tag = 'internal scratch']
  %s0 = inlined_call_operand.hbm [shape: f32[8,32], index: 0, kind: input, shape index: {}]
  %s1 = inlined_call_operand.hbm [shape: f32[32,128], index: 1, kind: input, shape index: {}]
  %s2 = inlined_call_operand.vmem [shape: f32[1,128], index: 2, kind: input, shape index: {}]
  %s3 = inlined_call_operand.hbm [shape: f32[128,128], index: 3, kind: input, shape index: {}]
  %s4 = inlined_call_operand.vmem [shape: f32[1,128], index: 4, kind: input, shape index: {}]
  %s5 = inlined_call_operand.hbm [shape: f32[128,128], index: 5, kind: input, shape index: {}]
  %s6 = inlined_call_operand.vmem [shape: f32[8,128], index: 6, kind: input, shape index: {}]
  %s7 = inlined_call_operand.hbm [shape: f32[128,256], index: 7, kind: input, shape index: {}]
  %s8 = inlined_call_operand.hbm [shape: f32[32,128], index: 8, kind: input, shape index: {}]
  %s9 = inlined_call_operand.vmem [shape: f32[1,128], index: 9, kind: input, shape index: {}]
  %s10 = inlined_call_operand.hbm [shape: f32[128,128], index: 10, kind: input, shape index: {}]
  %s11 = inlined_call_operand.vmem [shape: f32[1,128], index: 11, kind: input, shape index: {}]
  %s12 = inlined_call_operand.hbm [shape: f32[128,128], index: 12, kind: input, shape index: {}]
  %s13 = inlined_call_operand.hbm [shape: f32[8,128], index: 13, kind: output, shape index: {0}]
  %s14 = inlined_call_operand.vmem [shape: f32[8,4], index: 14, kind: output, shape index: {1}]
  %s15 = inlined_call_operand.hbm [shape: f32[8,256], index: 15, kind: output, shape index: {2}]
  %s16 = inlined_call_operand.hbm [shape: f32[8,128], index: 16, kind: output, shape index: {3}]
  %17 = xla_tuple %s13, %s14, %s15, %s16
  %s18 = sld [smem:[#allocation0]]
  $region118: #{tpu_custom_call.1} parent=0
    _
  %s20 = ssub.s32 1, %s18
  %s21 = scalar_select 0, %s20, %s18
  $region1: #{tpu_custom_call.1} parent=0
    #allocation2 [shape = 'u8[4096]{0}', space=vmem, size = 0x1000, scoped, tag = 'input window, operand 0, single buffered']
    #allocation3 [shape = 's32[1]{0}', space=sflag, size = 0x4, scoped, tag = 'scoped memory for tpu_custom_call.1']
    #allocation4 [shape = 's32[1]{0}', space=sflag, size = 0x4, scoped, tag = 'scoped memory for tpu_custom_call.1']
    #allocation5 [shape = 'u8[16384]{0}', space=vmem, size = 0x4000, scoped, tag = 'input window, operand 1, single buffered']
    #allocation6 [shape = 's32[1]{0}', space=sflag, size = 0x4, scoped, tag = 'scoped memory for tpu_custom_call.1']
    #allocation7 [shape = 'u8[65536]{0}', space=vmem, size = 0x10000, scoped, tag = 'input window, operand 3, single buffered']
    #allocation8 [shape = 'u8[65536]{0}', space=vmem, size = 0x10000, scoped, tag = 'input window, operand 5, single buffered']
    #allocation9 [shape = 's32[1]{0}', space=sflag, size = 0x4, scoped, tag = 'scoped memory for tpu_custom_call.1']
    #allocation10 [shape = 'u8[131072]{0}', space=vmem, size = 0x20000, scoped, tag = 'input window, operand 7, single buffered']
    #allocation11 [shape = 'u8[16384]{0}', space=vmem, size = 0x4000, scoped, tag = 'input window, operand 8, single buffered']
    #allocation12 [shape = 's32[1]{0}', space=sflag, size = 0x4, scoped, tag = 'scoped memory for tpu_custom_call.1']
    #allocation13 [shape = 'u8[65536]{0}', space=vmem, size = 0x10000, scoped, tag = 'input window, operand 10, single buffered']
    #allocation14 [shape = 'u8[65536]{0}', space=vmem, size = 0x10000, scoped, tag = 'input window, operand 12, single buffered']
    #allocation15 [shape = 's32[1]{0}', space=sflag, size = 0x4, scoped, tag = 'scoped memory for tpu_custom_call.1']
    #allocation16 [shape = 'u8[4096]{0}', space=vmem, size = 0x1000, scoped, tag = 'output window, operand 0, single buffered']
    #allocation17 [shape = 'u8[8192]{0}', space=vmem, size = 0x2000, scoped, tag = 'output window, operand 2, single buffered']
    #allocation18 [shape = 's32[1]{0}', space=sflag, size = 0x4, scoped, tag = 'scoped memory for tpu_custom_call.1']
    #allocation19 [shape = 'u8[4096]{0}', space=vmem, size = 0x1000, scoped, tag = 'output window, operand 3, single buffered']
    %22 = vsyncpa [#allocation3], 0
    %23 = vsyncpa [#allocation6], 0
    %24 = vsyncpa [#allocation9], 0
    %25 = vsyncpa [#allocation12], 0
    %26 = vsyncpa [#allocation15], 0
    %27 = vsyncpa [#allocation4], 0
    %28 = vsyncpa [#allocation18], 0
    // Predicated region
    $region2: #{tpu_custom_call.1} parent=1 // pred_check
      _
    $region3: #{tpu_custom_call.1} parent=1 // pred_check_branch
      %30 = sbr.rel (0) target = $region5
    $region4: #{tpu_custom_call.1} parent=1 // pred_region
      %s32 = ssub.s32 128, 128
      %33 = vsyncadd [#allocation3], %s32
      %s35 = sshll.u32 [#allocation2], 4
      %s36 = int_to_ptr.vmem [resolvable:$true] %s35
      %38 = dma.hbm_to_vmem [thread:$0]  %s0, 128, %s36, [#allocation3]
    $region5: #{tpu_custom_call.1} parent=1 // pred_fallthru
      _
    // Predicated region
    $region6: #{tpu_custom_call.1} parent=1 // pred_check
      _
    $region7: #{tpu_custom_call.1} parent=1 // pred_check_branch
      %40 = sbr.rel (0) target = $region9
    $region8: #{tpu_custom_call.1} parent=1 // pred_region
      %s42 = ssub.s32 512, 512
      %43 = vsyncadd [#allocation6], %s42
      %s44 = sshll.u32 [#allocation5], 4
      %s45 = int_to_ptr.vmem [resolvable:$true] %s44
      %50 = dma.hbm_to_vmem [thread:$0]  %s1, 512, %s45, [#allocation6], 128, 128, 8
    $region9: #{tpu_custom_call.1} parent=1 // pred_fallthru
      _
    // Predicated region
    $region10: #{tpu_custom_call.1} parent=1 // pred_check
      _
    $region11: #{tpu_custom_call.1} parent=1 // pred_check_branch
      %52 = sbr.rel (0) target = $region13
    $region12: #{tpu_custom_call.1} parent=1 // pred_region
      _
    $region13: #{tpu_custom_call.1} parent=1 // pred_fallthru
      _
    // Predicated region
    $region14: #{tpu_custom_call.1} parent=1 // pred_check
      _
    $region15: #{tpu_custom_call.1} parent=1 // pred_check_branch
      %54 = sbr.rel (0) target = $region17
    $region16: #{tpu_custom_call.1} parent=1 // pred_region
      %s56 = ssub.s32 2048, 2048
      %57 = vsyncadd [#allocation6], %s56
      %s58 = sshll.u32 [#allocation7], 4
      %s59 = int_to_ptr.vmem [resolvable:$true] %s58
      %64 = dma.hbm_to_vmem [thread:$0]  %s3, 2048, %s59, [#allocation6], 128, 128, 8
    $region17: #{tpu_custom_call.1} parent=1 // pred_fallthru
      _
    // Predicated region
    $region18: #{tpu_custom_call.1} parent=1 // pred_check
      _
    $region19: #{tpu_custom_call.1} parent=1 // pred_check_branch
      %66 = sbr.rel (0) target = $region21
    $region20: #{tpu_custom_call.1} parent=1 // pred_region
      _
    $region21: #{tpu_custom_call.1} parent=1 // pred_fallthru
      _
    // Predicated region
    $region22: #{tpu_custom_call.1} parent=1 // pred_check
      _
    $region23: #{tpu_custom_call.1} parent=1 // pred_check_branch
      %68 = sbr.rel (0) target = $region25
    $region24: #{tpu_custom_call.1} parent=1 // pred_region
      %s70 = ssub.s32 2048, 2048
      %71 = vsyncadd [#allocation9], %s70
      %s72 = sshll.u32 [#allocation8], 4
      %s73 = int_to_ptr.vmem [resolvable:$true] %s72
      %78 = dma.hbm_to_vmem [thread:$0]  %s5, 2048, %s73, [#allocation9], 128, 128, 8
    $region25: #{tpu_custom_call.1} parent=1 // pred_fallthru
      _
    // Predicated region
    $region26: #{tpu_custom_call.1} parent=1 // pred_check
      _
    $region27: #{tpu_custom_call.1} parent=1 // pred_check_branch
      %80 = sbr.rel (0) target = $region29
    $region28: #{tpu_custom_call.1} parent=1 // pred_region
      _
    $region29: #{tpu_custom_call.1} parent=1 // pred_fallthru
      _
    // Predicated region
    $region30: #{tpu_custom_call.1} parent=1 // pred_check
      _
    $region31: #{tpu_custom_call.1} parent=1 // pred_check_branch
      %82 = sbr.rel (0) target = $region33
    $region32: #{tpu_custom_call.1} parent=1 // pred_region
      %s84 = ssub.s32 4096, 4096
      %85 = vsyncadd [#allocation9], %s84
      %s86 = sshll.u32 [#allocation10], 4
      %s87 = int_to_ptr.vmem [resolvable:$true] %s86
      %92 = dma.hbm_to_vmem [thread:$0]  %s7, 4096, %s87, [#allocation9], 256, 256, 16
    $region33: #{tpu_custom_call.1} parent=1 // pred_fallthru
      _
    // Predicated region
    $region34: #{tpu_custom_call.1} parent=1 // pred_check
      _
    $region35: #{tpu_custom_call.1} parent=1 // pred_check_branch
      %94 = sbr.rel (0) target = $region37
    $region36: #{tpu_custom_call.1} parent=1 // pred_region
      %s96 = ssub.s32 512, 512
      %97 = vsyncadd [#allocation12], %s96
      %s98 = sshll.u32 [#allocation11], 4
      %s99 = int_to_ptr.vmem [resolvable:$true] %s98
      %104 = dma.hbm_to_vmem [thread:$0]  %s8, 512, %s99, [#allocation12], 128, 128, 8
    $region37: #{tpu_custom_call.1} parent=1 // pred_fallthru
      _
    // Predicated region
    $region38: #{tpu_custom_call.1} parent=1 // pred_check
      _
    $region39: #{tpu_custom_call.1} parent=1 // pred_check_branch
      %106 = sbr.rel (0) target = $region41
    $region40: #{tpu_custom_call.1} parent=1 // pred_region
      _
    $region41: #{tpu_custom_call.1} parent=1 // pred_fallthru
      _
    // Predicated region
    $region42: #{tpu_custom_call.1} parent=1 // pred_check
      _
    $region43: #{tpu_custom_call.1} parent=1 // pred_check_branch
      %108 = sbr.rel (0) target = $region45
    $region44: #{tpu_custom_call.1} parent=1 // pred_region
      %s110 = ssub.s32 2048, 2048
      %111 = vsyncadd [#allocation12], %s110
      %s112 = sshll.u32 [#allocation13], 4
      %s113 = int_to_ptr.vmem [resolvable:$true] %s112
      %118 = dma.hbm_to_vmem [thread:$0]  %s10, 2048, %s113, [#allocation12], 128, 128, 8
    $region45: #{tpu_custom_call.1} parent=1 // pred_fallthru
      _
    // Predicated region
    $region46: #{tpu_custom_call.1} parent=1 // pred_check
      _
    $region47: #{tpu_custom_call.1} parent=1 // pred_check_branch
      %120 = sbr.rel (0) target = $region49
    $region48: #{tpu_custom_call.1} parent=1 // pred_region
      _
    $region49: #{tpu_custom_call.1} parent=1 // pred_fallthru
      _
    // Predicated region
    $region50: #{tpu_custom_call.1} parent=1 // pred_check
      _
    $region51: #{tpu_custom_call.1} parent=1 // pred_check_branch
      %122 = sbr.rel (0) target = $region53
    $region52: #{tpu_custom_call.1} parent=1 // pred_region
      %s124 = ssub.s32 2048, 2048
      %125 = vsyncadd [#allocation15], %s124
      %s126 = sshll.u32 [#allocation14], 4
      %s127 = int_to_ptr.vmem [resolvable:$true] %s126
      %132 = dma.hbm_to_vmem [thread:$0]  %s12, 2048, %s127, [#allocation15], 128, 128, 8
    $region53: #{tpu_custom_call.1} parent=1 // pred_fallthru
      _
    // Predicated region
    $region54: #{tpu_custom_call.1} parent=1 // pred_check
      _
    $region55: #{tpu_custom_call.1} parent=1 // pred_check_branch
      %134 = sbr.rel (0) target = $region57
    $region56: #{tpu_custom_call.1} parent=1 // pred_region
      %135 = dma.done [#allocation3], 128
    $region57: #{tpu_custom_call.1} parent=1 // pred_fallthru
      _
    // Predicated region
    $region58: #{tpu_custom_call.1} parent=1 // pred_check
      _
    $region59: #{tpu_custom_call.1} parent=1 // pred_check_branch
      %137 = sbr.rel (0) target = $region61
    $region60: #{tpu_custom_call.1} parent=1 // pred_region
      %138 = dma.done [#allocation6], 512
    $region61: #{tpu_custom_call.1} parent=1 // pred_fallthru
      _
    // Predicated region
    $region62: #{tpu_custom_call.1} parent=1 // pred_check
      _
    $region63: #{tpu_custom_call.1} parent=1 // pred_check_branch
      %140 = sbr.rel (0) target = $region65
    $region64: #{tpu_custom_call.1} parent=1 // pred_region
      %141 = dma.done [#allocation6], 2048
    $region65: #{tpu_custom_call.1} parent=1 // pred_fallthru
      _
    // Predicated region
    $region66: #{tpu_custom_call.1} parent=1 // pred_check
      _
    $region67: #{tpu_custom_call.1} parent=1 // pred_check_branch
      %143 = sbr.rel (0) target = $region69
    $region68: #{tpu_custom_call.1} parent=1 // pred_region
      %144 = dma.done [#allocation9], 2048
    $region69: #{tpu_custom_call.1} parent=1 // pred_fallthru
      _
    // Predicated region
    $region70: #{tpu_custom_call.1} parent=1 // pred_check
      _
    $region71: #{tpu_custom_call.1} parent=1 // pred_check_branch
      %146 = sbr.rel (0) target = $region73
    $region72: #{tpu_custom_call.1} parent=1 // pred_region
      %147 = dma.done [#allocation9], 4096
    $region73: #{tpu_custom_call.1} parent=1 // pred_fallthru
      _
    // Predicated region
    $region74: #{tpu_custom_call.1} parent=1 // pred_check
      _
    $region75: #{tpu_custom_call.1} parent=1 // pred_check_branch
      %149 = sbr.rel (0) target = $region77
    $region76: #{tpu_custom_call.1} parent=1 // pred_region
      %150 = dma.done [#allocation12], 512
    $region77: #{tpu_custom_call.1} parent=1 // pred_fallthru
      _
    // Predicated region
    $region78: #{tpu_custom_call.1} parent=1 // pred_check
      _
    $region79: #{tpu_custom_call.1} parent=1 // pred_check_branch
      %152 = sbr.rel (0) target = $region81
    $region80: #{tpu_custom_call.1} parent=1 // pred_region
      %153 = dma.done [#allocation12], 2048
    $region81: #{tpu_custom_call.1} parent=1 // pred_fallthru
      _
    // Predicated region
    $region82: #{tpu_custom_call.1} parent=1 // pred_check
      _
    $region83: #{tpu_custom_call.1} parent=1 // pred_check_branch
      %155 = sbr.rel (0) target = $region85
    $region84: #{tpu_custom_call.1} parent=1 // pred_region
      %156 = dma.done [#allocation15], 2048
    $region85: #{tpu_custom_call.1} parent=1 // pred_fallthru
      _
    %v157 = vld [vmem:[#allocation2] sm:$0xff]
    %v158 = vld [vmem:[#allocation5] sm:$0xff]
    %v159 = vld [vmem:[#allocation5 + $0x8] sm:$0xff]
    %v160 = vld [vmem:[#allocation5 + $0x10] sm:$0xff]
    %v161 = vld [vmem:[#allocation5 + $0x18] sm:$0xff]
    %v162 = vld [vmem:[%s2] sm:$0x1]
    %v164 = vlaneseq
    %v165 = vshrl.u32 %v164, 7
    %v166 = vsub.s32 0, %v165
    %v167 = vrot.slane %v162, %v166
    %vm169 = vcmask 261120
    %v171 = vsel %vm169, %v157, 0
    %173 = vmatprep.subr.mxu0 0.0
    %174 = vmatpush1.msra.mxu0 %v158
    %175 = vmatprep.subr.mxu0 0.0
    %176 = vmatpush1.msra.mxu0 %v159
    %177 = vmatprep.subr.mxu0 0.0
    %178 = vmatpush1.msra.mxu0 %v160
    %179 = vmatprep.subr.mxu0 0.0
    %180 = vmatpush1.msra.mxu0 %v161
    %181 = vmatprep.subr.mxu0 0.0
    %182 = vmatpush1.msra.mxu0 0.0
    %183 = vmatprep.subr.mxu0 0.0
    %184 = vmatpush1.msra.mxu0 0.0
    %185 = vmatprep.subr.mxu0 0.0
    %186 = vmatpush1.msra.mxu0 0.0
    %187 = vmatprep.subr.mxu0 0.0
    %188 = vmatpush1.msra.mxu0 0.0
    %189 = vmatprep.subr.mxu0 0.0
    %190 = vmatpush1.msra.mxu0 0.0
    %191 = vmatprep.subr.mxu0 0.0
    %192 = vmatpush1.msra.mxu0 0.0
    %193 = vmatprep.subr.mxu0 0.0
    %194 = vmatpush1.msra.mxu0 0.0
    %195 = vmatprep.subr.mxu0 0.0
    %196 = vmatpush1.msra.mxu0 0.0
    %197 = vmatprep.subr.mxu0 0.0
    %198 = vmatpush1.msra.mxu0 0.0
    %199 = vmatprep.subr.mxu0 0.0
    %200 = vmatpush1.msra.mxu0 0.0
    %201 = vmatprep.subr.mxu0 0.0
    %202 = vmatpush1.msra.mxu0 0.0
    %203 = vmatprep.subr.mxu0 0.0
    %204 = vmatpush1.msra.mxu0 0.0
    %205 = vmatprep.subr.mxu0 0.0
    %206 = vmatpush1.msra.mxu0 0.0
    %207 = vmatprep.subr.mxu0 0.0
    %208 = vmatpush1.msra.mxu0 0.0
    %209 = vmatprep.subr.mxu0 0.0
    %210 = vmatpush1.msra.mxu0 0.0
    %211 = vmatprep.subr.mxu0 0.0
    %212 = vmatpush1.msra.mxu0 0.0
    %213 = vmatprep.subr.mxu0 0.0
    %214 = vmatpush1.msra.mxu0 0.0
    %215 = vmatprep.subr.mxu0 0.0
    %216 = vmatpush1.msra.mxu0 0.0
    %217 = vmatprep.subr.mxu0 0.0
    %218 = vmatpush1.msra.mxu0 0.0
    %219 = vmatprep.subr.mxu0 0.0
    %220 = vmatpush1.msra.mxu0 0.0
    %221 = vmatprep.subr.mxu0 0.0
    %222 = vmatpush1.msra.mxu0 0.0
    %223 = vmatprep.subr.mxu0 0.0
    %224 = vmatpush1.msra.mxu0 0.0
    %225 = vmatprep.subr.mxu0 0.0
    %226 = vmatpush1.msra.mxu0 0.0
    %227 = vmatprep.subr.mxu0 0.0
    %228 = vmatpush1.msra.mxu0 0.0
    %229 = vmatprep.subr.mxu0 0.0
    %230 = vmatpush1.msra.mxu0 0.0
    %231 = vmatprep.subr.mxu0 0.0
    %232 = vmatpush1.msra.mxu0 0.0
    %233 = vmatprep.subr.mxu0 0.0
    %234 = vmatpush1.msra.mxu0 0.0
    %235 = vmatprep.subr.mxu0 0.0
    %236 = vmatpush1.msra.mxu0 0.0
    %237 = vmatprep.mubr.f32.mxu0 0.0
    %238 = vmatmul.mubr.f32.gmra.mrb[0].mxu0 %v171
    %v239 = vpop.f32.mrb[0].mxu0
    %v240 = vadd.f32 %v167, %v239
    %v241 = vpop.f32.mrb[0].mxu0
    %242 = vdwg.mxu0
    %v243 = vmax.f32 %v240, 0.0
    %v244 = vld [vmem:[#allocation7] sm:$0xff]
    %v245 = vld [vmem:[#allocation7 + $0x8] sm:$0xff]
    %v246 = vld [vmem:[#allocation7 + $0x10] sm:$0xff]
    %v247 = vld [vmem:[#allocation7 + $0x18] sm:$0xff]
    %v248 = vld [vmem:[#allocation7 + $0x20] sm:$0xff]
    %v249 = vld [vmem:[#allocation7 + $0x28] sm:$0xff]
    %v250 = vld [vmem:[#allocation7 + $0x30] sm:$0xff]
    %v251 = vld [vmem:[#allocation7 + $0x38] sm:$0xff]
    %v252 = vld [vmem:[#allocation7 + $0x40] sm:$0xff]
    %v253 = vld [vmem:[#allocation7 + $0x48] sm:$0xff]
    %v254 = vld [vmem:[#allocation7 + $0x50] sm:$0xff]
    %v255 = vld [vmem:[#allocation7 + $0x58] sm:$0xff]
    %v256 = vld [vmem:[#allocation7 + $0x60] sm:$0xff]
    %v257 = vld [vmem:[#allocation7 + $0x68] sm:$0xff]
    %v258 = vld [vmem:[#allocation7 + $0x70] sm:$0xff]
    %v259 = vld [vmem:[#allocation7 + $0x78] sm:$0xff]
    %v260 = vld [vmem:[%s4] sm:$0x1]
    %v262 = vlaneseq
    %v263 = vshrl.u32 %v262, 7
    %v264 = vsub.s32 0, %v263
    %v265 = vrot.slane %v260, %v264
    %267 = vmatprep.subr.mxu0 0.0
    %268 = vmatpush1.msra.mxu0 %v244
    %269 = vmatprep.subr.mxu0 0.0
    %270 = vmatpush1.msra.mxu0 %v245
    %271 = vmatprep.subr.mxu0 0.0
    %272 = vmatpush1.msra.mxu0 %v246
    %273 = vmatprep.subr.mxu0 0.0
    %274 = vmatpush1.msra.mxu0 %v247
    %275 = vmatprep.subr.mxu0 0.0
    %276 = vmatpush1.msra.mxu0 %v248
    %277 = vmatprep.subr.mxu0 0.0
    %278 = vmatpush1.msra.mxu0 %v249
    %279 = vmatprep.subr.mxu0 0.0
    %280 = vmatpush1.msra.mxu0 %v250
    %281 = vmatprep.subr.mxu0 0.0
    %282 = vmatpush1.msra.mxu0 %v251
    %283 = vmatprep.subr.mxu0 0.0
    %284 = vmatpush1.msra.mxu0 %v252
    %285 = vmatprep.subr.mxu0 0.0
    %286 = vmatpush1.msra.mxu0 %v253
    %287 = vmatprep.subr.mxu0 0.0
    %288 = vmatpush1.msra.mxu0 %v254
    %289 = vmatprep.subr.mxu0 0.0
    %290 = vmatpush1.msra.mxu0 %v255
    %291 = vmatprep.subr.mxu0 0.0
    %292 = vmatpush1.msra.mxu0 %v256
    %293 = vmatprep.subr.mxu0 0.0
    %294 = vmatpush1.msra.mxu0 %v257
    %295 = vmatprep.subr.mxu0 0.0
    %296 = vmatpush1.msra.mxu0 %v258
    %297 = vmatprep.subr.mxu0 0.0
    %298 = vmatpush1.msra.mxu0 %v259
    %299 = vmatprep.subr.mxu0 0.0
    %300 = vmatpush1.msra.mxu0 0.0
    %301 = vmatprep.subr.mxu0 0.0
    %302 = vmatpush1.msra.mxu0 0.0
    %303 = vmatprep.subr.mxu0 0.0
    %304 = vmatpush1.msra.mxu0 0.0
    %305 = vmatprep.subr.mxu0 0.0
    %306 = vmatpush1.msra.mxu0 0.0
    %307 = vmatprep.subr.mxu0 0.0
    %308 = vmatpush1.msra.mxu0 0.0
    %309 = vmatprep.subr.mxu0 0.0
    %310 = vmatpush1.msra.mxu0 0.0
    %311 = vmatprep.subr.mxu0 0.0
    %312 = vmatpush1.msra.mxu0 0.0
    %313 = vmatprep.subr.mxu0 0.0
    %314 = vmatpush1.msra.mxu0 0.0
    %315 = vmatprep.subr.mxu0 0.0
    %316 = vmatpush1.msra.mxu0 0.0
    %317 = vmatprep.subr.mxu0 0.0
    %318 = vmatpush1.msra.mxu0 0.0
    %319 = vmatprep.subr.mxu0 0.0
    %320 = vmatpush1.msra.mxu0 0.0
    %321 = vmatprep.subr.mxu0 0.0
    %322 = vmatpush1.msra.mxu0 0.0
    %323 = vmatprep.subr.mxu0 0.0
    %324 = vmatpush1.msra.mxu0 0.0
    %325 = vmatprep.subr.mxu0 0.0
    %326 = vmatpush1.msra.mxu0 0.0
    %327 = vmatprep.subr.mxu0 0.0
    %328 = vmatpush1.msra.mxu0 0.0
    %329 = vmatprep.subr.mxu0 0.0
    %330 = vmatpush1.msra.mxu0 0.0
    %331 = vmatprep.mubr.f32.mxu0 0.0
    %332 = vmatmul.mubr.f32.gmra.mrb[0].mxu0 %v243
    %v333 = vpop.f32.mrb[0].mxu0
    %v334 = vadd.f32 %v265, %v333
    %v335 = vpop.f32.mrb[0].mxu0
    %336 = vdwg.mxu0
    %v337 = vmax.f32 %v334, 0.0
    %v338 = vld [vmem:[#allocation8] sm:$0xff]
    %v339 = vld [vmem:[#allocation8 + $0x8] sm:$0xff]
    %v340 = vld [vmem:[#allocation8 + $0x10] sm:$0xff]
    %v341 = vld [vmem:[#allocation8 + $0x18] sm:$0xff]
    %v342 = vld [vmem:[#allocation8 + $0x20] sm:$0xff]
    %v343 = vld [vmem:[#allocation8 + $0x28] sm:$0xff]
    %v344 = vld [vmem:[#allocation8 + $0x30] sm:$0xff]
    %v345 = vld [vmem:[#allocation8 + $0x38] sm:$0xff]
    %v346 = vld [vmem:[#allocation8 + $0x40] sm:$0xff]
    %v347 = vld [vmem:[#allocation8 + $0x48] sm:$0xff]
    %v348 = vld [vmem:[#allocation8 + $0x50] sm:$0xff]
    %v349 = vld [vmem:[#allocation8 + $0x58] sm:$0xff]
    %v350 = vld [vmem:[#allocation8 + $0x60] sm:$0xff]
    %v351 = vld [vmem:[#allocation8 + $0x68] sm:$0xff]
    %v352 = vld [vmem:[#allocation8 + $0x70] sm:$0xff]
    %v353 = vld [vmem:[#allocation8 + $0x78] sm:$0xff]
    %354 = vmatprep.subr.mxu0 0.0
    %355 = vmatpush1.msra.mxu0 %v338
    %356 = vmatprep.subr.mxu0 0.0
    %357 = vmatpush1.msra.mxu0 %v339
    %358 = vmatprep.subr.mxu0 0.0
    %359 = vmatpush1.msra.mxu0 %v340
    %360 = vmatprep.subr.mxu0 0.0
    %361 = vmatpush1.msra.mxu0 %v341
    %362 = vmatprep.subr.mxu0 0.0
    %363 = vmatpush1.msra.mxu0 %v342
    %364 = vmatprep.subr.mxu0 0.0
    %365 = vmatpush1.msra.mxu0 %v343
    %366 = vmatprep.subr.mxu0 0.0
    %367 = vmatpush1.msra.mxu0 %v344
    %368 = vmatprep.subr.mxu0 0.0
    %369 = vmatpush1.msra.mxu0 %v345
    %370 = vmatprep.subr.mxu0 0.0
    %371 = vmatpush1.msra.mxu0 %v346
    %372 = vmatprep.subr.mxu0 0.0
    %373 = vmatpush1.msra.mxu0 %v347
    %374 = vmatprep.subr.mxu0 0.0
    %375 = vmatpush1.msra.mxu0 %v348
    %376 = vmatprep.subr.mxu0 0.0
    %377 = vmatpush1.msra.mxu0 %v349
    %378 = vmatprep.subr.mxu0 0.0
    %379 = vmatpush1.msra.mxu0 %v350
    %380 = vmatprep.subr.mxu0 0.0
    %381 = vmatpush1.msra.mxu0 %v351
    %382 = vmatprep.subr.mxu0 0.0
    %383 = vmatpush1.msra.mxu0 %v352
    %384 = vmatprep.subr.mxu0 0.0
    %385 = vmatpush1.msra.mxu0 %v353
    %386 = vmatprep.subr.mxu0 0.0
    %387 = vmatpush1.msra.mxu0 0.0
    %388 = vmatprep.subr.mxu0 0.0
    %389 = vmatpush1.msra.mxu0 0.0
    %390 = vmatprep.subr.mxu0 0.0
    %391 = vmatpush1.msra.mxu0 0.0
    %392 = vmatprep.subr.mxu0 0.0
    %393 = vmatpush1.msra.mxu0 0.0
    %394 = vmatprep.subr.mxu0 0.0
    %395 = vmatpush1.msra.mxu0 0.0
    %396 = vmatprep.subr.mxu0 0.0
    %397 = vmatpush1.msra.mxu0 0.0
    %398 = vmatprep.subr.mxu0 0.0
    %399 = vmatpush1.msra.mxu0 0.0
    %400 = vmatprep.subr.mxu0 0.0
    %401 = vmatpush1.msra.mxu0 0.0
    %402 = vmatprep.subr.mxu0 0.0
    %403 = vmatpush1.msra.mxu0 0.0
    %404 = vmatprep.subr.mxu0 0.0
    %405 = vmatpush1.msra.mxu0 0.0
    %406 = vmatprep.subr.mxu0 0.0
    %407 = vmatpush1.msra.mxu0 0.0
    %408 = vmatprep.subr.mxu0 0.0
    %409 = vmatpush1.msra.mxu0 0.0
    %410 = vmatprep.subr.mxu0 0.0
    %411 = vmatpush1.msra.mxu0 0.0
    %412 = vmatprep.subr.mxu0 0.0
    %413 = vmatpush1.msra.mxu0 0.0
    %414 = vmatprep.subr.mxu0 0.0
    %415 = vmatpush1.msra.mxu0 0.0
    %416 = vmatprep.subr.mxu0 0.0
    %417 = vmatpush1.msra.mxu0 0.0
    %418 = vmatprep.mubr.f32.mxu0 0.0
    %419 = vmatmul.mubr.f32.gmra.mrb[0].mxu0 %v337
    %v420 = vpop.f32.mrb[0].mxu0
    %v421 = vadd.f32 0.0, %v420
    %v422 = vpop.f32.mrb[0].mxu0
    %423 = vdwg.mxu0
    %424 = vst [vmem:[#allocation16] sm:$0xff] %v421
    %vm425 = vcmask 687744
    %v426 = vsel %vm425, %v421, -inf
    %427 = vmax.xlane.f32.xlu0 %v426
    %v428 = vpop.xlane.xlu0 %427
    %v429 = vsub.f32 %v421, %v428
    %v430 = vmul.f32 %v429, 1.442695
    %v431 = vpow.pop %v430
    %433 = vrot.lane.b32.xlu0 %v431, 48
    %v434 = vpop.permute.xlu0 %433
    %vm436 = vcmask 31744
    %v437 = vsel %vm436, %v434, 0.0
    %438 = vadd.xlane.f32.xlu0 %v437
    %v439 = vpop.xlane.xlu0 %438
    %v440 = vrcp.pop %v439
    %v441 = vmul.f32 %v431, %v440
    %443 = vrot.lane.b32.xlu0 %v441, 48
    %v444 = vpop.permute.xlu0 %443
    %446 = vst.msk [vmem:[%s14] sm:$0xff] %vm436, %v444
    %v447 = vld [vmem:[%s6] sm:$0xff]
    %449 = vrot.lane.b32.xlu0 %v421, 64
    %v450 = vpop.permute.xlu0 %449
    %vm451 = vcmask 64512
    %v452 = vsel %vm451, %v450, 0
    %454 = vmatprep.subr.mxu0 0.0
    %455 = vmatpush1.msra.mxu0 %v447
    %456 = vmatprep.subr.mxu0 0.0
    %457 = vmatpush1.msra.mxu0 0.0
    %458 = vmatprep.subr.mxu0 0.0
    %459 = vmatpush1.msra.mxu0 0.0
    %460 = vmatprep.subr.mxu0 0.0
    %461 = vmatpush1.msra.mxu0 0.0
    %462 = vmatprep.subr.mxu0 0.0
    %463 = vmatpush1.msra.mxu0 0.0
    %464 = vmatprep.subr.mxu0 0.0
    %465 = vmatpush1.msra.mxu0 0.0
    %466 = vmatprep.subr.mxu0 0.0
    %467 = vmatpush1.msra.mxu0 0.0
    %468 = vmatprep.subr.mxu0 0.0
    %469 = vmatpush1.msra.mxu0 0.0
    %470 = vmatprep.subr.mxu0 0.0
    %471 = vmatpush1.msra.mxu0 0.0
    %472 = vmatprep.subr.mxu0 0.0
    %473 = vmatpush1.msra.mxu0 0.0
    %474 = vmatprep.subr.mxu0 0.0
    %475 = vmatpush1.msra.mxu0 0.0
    %476 = vmatprep.subr.mxu0 0.0
    %477 = vmatpush1.msra.mxu0 0.0
    %478 = vmatprep.subr.mxu0 0.0
    %479 = vmatpush1.msra.mxu0 0.0
    %480 = vmatprep.subr.mxu0 0.0
    %481 = vmatpush1.msra.mxu0 0.0
    %482 = vmatprep.subr.mxu0 0.0
    %483 = vmatpush1.msra.mxu0 0.0
    %484 = vmatprep.subr.mxu0 0.0
    %485 = vmatpush1.msra.mxu0 0.0
    %486 = vmatprep.subr.mxu0 0.0
    %487 = vmatpush1.msra.mxu0 0.0
    %488 = vmatprep.subr.mxu0 0.0
    %489 = vmatpush1.msra.mxu0 0.0
    %490 = vmatprep.subr.mxu0 0.0
    %491 = vmatpush1.msra.mxu0 0.0
    %492 = vmatprep.subr.mxu0 0.0
    %493 = vmatpush1.msra.mxu0 0.0
    %494 = vmatprep.subr.mxu0 0.0
    %495 = vmatpush1.msra.mxu0 0.0
    %496 = vmatprep.subr.mxu0 0.0
    %497 = vmatpush1.msra.mxu0 0.0
    %498 = vmatprep.subr.mxu0 0.0
    %499 = vmatpush1.msra.mxu0 0.0
    %500 = vmatprep.subr.mxu0 0.0
    %501 = vmatpush1.msra.mxu0 0.0
    %502 = vmatprep.subr.mxu0 0.0
    %503 = vmatpush1.msra.mxu0 0.0
    %504 = vmatprep.subr.mxu0 0.0
    %505 = vmatpush1.msra.mxu0 0.0
    %506 = vmatprep.subr.mxu0 0.0
    %507 = vmatpush1.msra.mxu0 0.0
    %508 = vmatprep.subr.mxu0 0.0
    %509 = vmatpush1.msra.mxu0 0.0
    %510 = vmatprep.subr.mxu0 0.0
    %511 = vmatpush1.msra.mxu0 0.0
    %512 = vmatprep.subr.mxu0 0.0
    %513 = vmatpush1.msra.mxu0 0.0
    %514 = vmatprep.subr.mxu0 0.0
    %515 = vmatpush1.msra.mxu0 0.0
    %516 = vmatprep.subr.mxu0 0.0
    %517 = vmatpush1.msra.mxu0 0.0
    %518 = vmatprep.mubr.f32.mxu0 0.0
    %519 = vmatmul.mubr.f32.gmra.mrb[0].mxu0 %v452
    %v520 = vpop.f32.mrb[0].mxu0
    %v521 = vadd.f32 0.0, %v520
    %v522 = vpop.f32.mrb[0].mxu0
    %523 = vdwg.mxu0
    %v524 = vtanh.pop %v521
    %v525 = vld [vmem:[#allocation10] sm:$0xff]
    %v526 = vld [vmem:[#allocation10 + $0x8] sm:$0xff]
    %v527 = vld [vmem:[#allocation10 + $0x10] sm:$0xff]
    %v528 = vld [vmem:[#allocation10 + $0x18] sm:$0xff]
    %v529 = vld [vmem:[#allocation10 + $0x20] sm:$0xff]
    %v530 = vld [vmem:[#allocation10 + $0x28] sm:$0xff]
    %v531 = vld [vmem:[#allocation10 + $0x30] sm:$0xff]
    %v532 = vld [vmem:[#allocation10 + $0x38] sm:$0xff]
    %v533 = vld [vmem:[#allocation10 + $0x40] sm:$0xff]
    %v534 = vld [vmem:[#allocation10 + $0x48] sm:$0xff]
    %v535 = vld [vmem:[#allocation10 + $0x50] sm:$0xff]
    %v536 = vld [vmem:[#allocation10 + $0x58] sm:$0xff]
    %v537 = vld [vmem:[#allocation10 + $0x60] sm:$0xff]
    %v538 = vld [vmem:[#allocation10 + $0x68] sm:$0xff]
    %v539 = vld [vmem:[#allocation10 + $0x70] sm:$0xff]
    %v540 = vld [vmem:[#allocation10 + $0x78] sm:$0xff]
    %v541 = vld [vmem:[#allocation10 + $0x80] sm:$0xff]
    %v542 = vld [vmem:[#allocation10 + $0x88] sm:$0xff]
    %v543 = vld [vmem:[#allocation10 + $0x90] sm:$0xff]
    %v544 = vld [vmem:[#allocation10 + $0x98] sm:$0xff]
    %v545 = vld [vmem:[#allocation10 + $0xa0] sm:$0xff]
    %v546 = vld [vmem:[#allocation10 + $0xa8] sm:$0xff]
    %v547 = vld [vmem:[#allocation10 + $0xb0] sm:$0xff]
    %v548 = vld [vmem:[#allocation10 + $0xb8] sm:$0xff]
    %v549 = vld [vmem:[#allocation10 + $0xc0] sm:$0xff]
    %v550 = vld [vmem:[#allocation10 + $0xc8] sm:$0xff]
    %v551 = vld [vmem:[#allocation10 + $0xd0] sm:$0xff]
    %v552 = vld [vmem:[#allocation10 + $0xd8] sm:$0xff]
    %v553 = vld [vmem:[#allocation10 + $0xe0] sm:$0xff]
    %v554 = vld [vmem:[#allocation10 + $0xe8] sm:$0xff]
    %v555 = vld [vmem:[#allocation10 + $0xf0] sm:$0xff]
    %v556 = vld [vmem:[#allocation10 + $0xf8] sm:$0xff]
    %557 = vmatprep.subr.mxu0 %v526
    %558 = vmatpush1.msra.mxu0 %v525
    %559 = vmatprep.subr.mxu0 %v528
    %560 = vmatpush1.msra.mxu0 %v527
    %561 = vmatprep.subr.mxu0 %v530
    %562 = vmatpush1.msra.mxu0 %v529
    %563 = vmatprep.subr.mxu0 %v532
    %564 = vmatpush1.msra.mxu0 %v531
    %565 = vmatprep.subr.mxu0 %v534
    %566 = vmatpush1.msra.mxu0 %v533
    %567 = vmatprep.subr.mxu0 %v536
    %568 = vmatpush1.msra.mxu0 %v535
    %569 = vmatprep.subr.mxu0 %v538
    %570 = vmatpush1.msra.mxu0 %v537
    %571 = vmatprep.subr.mxu0 %v540
    %572 = vmatpush1.msra.mxu0 %v539
    %573 = vmatprep.subr.mxu0 %v542
    %574 = vmatpush1.msra.mxu0 %v541
    %575 = vmatprep.subr.mxu0 %v544
    %576 = vmatpush1.msra.mxu0 %v543
    %577 = vmatprep.subr.mxu0 %v546
    %578 = vmatpush1.msra.mxu0 %v545
    %579 = vmatprep.subr.mxu0 %v548
    %580 = vmatpush1.msra.mxu0 %v547
    %581 = vmatprep.subr.mxu0 %v550
    %582 = vmatpush1.msra.mxu0 %v549
    %583 = vmatprep.subr.mxu0 %v552
    %584 = vmatpush1.msra.mxu0 %v551
    %585 = vmatprep.subr.mxu0 %v554
    %586 = vmatpush1.msra.mxu0 %v553
    %587 = vmatprep.subr.mxu0 %v556
    %588 = vmatpush1.msra.mxu0 %v555
    %589 = vmatprep.subr.mxu0 0.0
    %590 = vmatpush1.msra.mxu0 0.0
    %591 = vmatprep.subr.mxu0 0.0
    %592 = vmatpush1.msra.mxu0 0.0
    %593 = vmatprep.subr.mxu0 0.0
    %594 = vmatpush1.msra.mxu0 0.0
    %595 = vmatprep.subr.mxu0 0.0
    %596 = vmatpush1.msra.mxu0 0.0
    %597 = vmatprep.subr.mxu0 0.0
    %598 = vmatpush1.msra.mxu0 0.0
    %599 = vmatprep.subr.mxu0 0.0
    %600 = vmatpush1.msra.mxu0 0.0
    %601 = vmatprep.subr.mxu0 0.0
    %602 = vmatpush1.msra.mxu0 0.0
    %603 = vmatprep.subr.mxu0 0.0
    %604 = vmatpush1.msra.mxu0 0.0
    %605 = vmatprep.subr.mxu0 0.0
    %606 = vmatpush1.msra.mxu0 0.0
    %607 = vmatprep.subr.mxu0 0.0
    %608 = vmatpush1.msra.mxu0 0.0
    %609 = vmatprep.subr.mxu0 0.0
    %610 = vmatpush1.msra.mxu0 0.0
    %611 = vmatprep.subr.mxu0 0.0
    %612 = vmatpush1.msra.mxu0 0.0
    %613 = vmatprep.subr.mxu0 0.0
    %614 = vmatpush1.msra.mxu0 0.0
    %615 = vmatprep.subr.mxu0 0.0
    %616 = vmatpush1.msra.mxu0 0.0
    %617 = vmatprep.subr.mxu0 0.0
    %618 = vmatpush1.msra.mxu0 0.0
    %619 = vmatprep.subr.mxu0 0.0
    %620 = vmatpush1.msra.mxu0 0.0
    %621 = vmatprep.mubr.f32.mxu0 0.0
    %622 = vmatmul.mubr.f32.gmra.mrb[0].mxu0 %v524
    %v623 = vpop.f32.mrb[0].mxu0
    %v624 = vadd.f32 0.0, %v623
    %v625 = vpop.f32.mrb[0].mxu0
    %v626 = vadd.f32 0.0, %v625
    %627 = vdwg.mxu0
    %628 = vst [vmem:[#allocation17] sm:$0xff] %v624
    %629 = vst [vmem:[#allocation17 + $0x8] sm:$0xff] %v626
    %v630 = vld [vmem:[#allocation11] sm:$0xff]
    %v631 = vld [vmem:[#allocation11 + $0x8] sm:$0xff]
    %v632 = vld [vmem:[#allocation11 + $0x10] sm:$0xff]
    %v633 = vld [vmem:[#allocation11 + $0x18] sm:$0xff]
    %v634 = vld [vmem:[%s9] sm:$0x1]
    %v636 = vlaneseq
    %v637 = vshrl.u32 %v636, 7
    %v638 = vsub.s32 0, %v637
    %v639 = vrot.slane %v634, %v638
    %v641 = vsel %vm169, %v421, 0
    %643 = vmatprep.subr.mxu0 0.0
    %644 = vmatpush1.msra.mxu0 %v630
    %645 = vmatprep.subr.mxu0 0.0
    %646 = vmatpush1.msra.mxu0 %v631
    %647 = vmatprep.subr.mxu0 0.0
    %648 = vmatpush1.msra.mxu0 %v632
    %649 = vmatprep.subr.mxu0 0.0
    %650 = vmatpush1.msra.mxu0 %v633
    %651 = vmatprep.subr.mxu0 0.0
    %652 = vmatpush1.msra.mxu0 0.0
    %653 = vmatprep.subr.mxu0 0.0
    %654 = vmatpush1.msra.mxu0 0.0
    %655 = vmatprep.subr.mxu0 0.0
    %656 = vmatpush1.msra.mxu0 0.0
    %657 = vmatprep.subr.mxu0 0.0
    %658 = vmatpush1.msra.mxu0 0.0
    %659 = vmatprep.subr.mxu0 0.0
    %660 = vmatpush1.msra.mxu0 0.0
    %661 = vmatprep.subr.mxu0 0.0
    %662 = vmatpush1.msra.mxu0 0.0
    %663 = vmatprep.subr.mxu0 0.0
    %664 = vmatpush1.msra.mxu0 0.0
    %665 = vmatprep.subr.mxu0 0.0
    %666 = vmatpush1.msra.mxu0 0.0
    %667 = vmatprep.subr.mxu0 0.0
    %668 = vmatpush1.msra.mxu0 0.0
    %669 = vmatprep.subr.mxu0 0.0
    %670 = vmatpush1.msra.mxu0 0.0
    %671 = vmatprep.subr.mxu0 0.0
    %672 = vmatpush1.msra.mxu0 0.0
    %673 = vmatprep.subr.mxu0 0.0
    %674 = vmatpush1.msra.mxu0 0.0
    %675 = vmatprep.subr.mxu0 0.0
    %676 = vmatpush1.msra.mxu0 0.0
    %677 = vmatprep.subr.mxu0 0.0
    %678 = vmatpush1.msra.mxu0 0.0
    %679 = vmatprep.subr.mxu0 0.0
    %680 = vmatpush1.msra.mxu0 0.0
    %681 = vmatprep.subr.mxu0 0.0
    %682 = vmatpush1.msra.mxu0 0.0
    %683 = vmatprep.subr.mxu0 0.0
    %684 = vmatpush1.msra.mxu0 0.0
    %685 = vmatprep.subr.mxu0 0.0
    %686 = vmatpush1.msra.mxu0 0.0
    %687 = vmatprep.subr.mxu0 0.0
    %688 = vmatpush1.msra.mxu0 0.0
    %689 = vmatprep.subr.mxu0 0.0
    %690 = vmatpush1.msra.mxu0 0.0
    %691 = vmatprep.subr.mxu0 0.0
    %692 = vmatpush1.msra.mxu0 0.0
    %693 = vmatprep.subr.mxu0 0.0
    %694 = vmatpush1.msra.mxu0 0.0
    %695 = vmatprep.subr.mxu0 0.0
    %696 = vmatpush1.msra.mxu0 0.0
    %697 = vmatprep.subr.mxu0 0.0
    %698 = vmatpush1.msra.mxu0 0.0
    %699 = vmatprep.subr.mxu0 0.0
    %700 = vmatpush1.msra.mxu0 0.0
    %701 = vmatprep.subr.mxu0 0.0
    %702 = vmatpush1.msra.mxu0 0.0
    %703 = vmatprep.subr.mxu0 0.0
    %704 = vmatpush1.msra.mxu0 0.0
    %705 = vmatprep.subr.mxu0 0.0
    %706 = vmatpush1.msra.mxu0 0.0
    %707 = vmatprep.mubr.f32.mxu0 0.0
    %708 = vmatmul.mubr.f32.gmra.mrb[0].mxu0 %v641
    %v709 = vpop.f32.mrb[0].mxu0
    %v710 = vadd.f32 %v639, %v709
    %v711 = vpop.f32.mrb[0].mxu0
    %712 = vdwg.mxu0
    %v713 = vmax.f32 %v710, 0.0
    %v714 = vld [vmem:[#allocation13] sm:$0xff]
    %v715 = vld [vmem:[#allocation13 + $0x8] sm:$0xff]
    %v716 = vld [vmem:[#allocation13 + $0x10] sm:$0xff]
    %v717 = vld [vmem:[#allocation13 + $0x18] sm:$0xff]
    %v718 = vld [vmem:[#allocation13 + $0x20] sm:$0xff]
    %v719 = vld [vmem:[#allocation13 + $0x28] sm:$0xff]
    %v720 = vld [vmem:[#allocation13 + $0x30] sm:$0xff]
    %v721 = vld [vmem:[#allocation13 + $0x38] sm:$0xff]
    %v722 = vld [vmem:[#allocation13 + $0x40] sm:$0xff]
    %v723 = vld [vmem:[#allocation13 + $0x48] sm:$0xff]
    %v724 = vld [vmem:[#allocation13 + $0x50] sm:$0xff]
    %v725 = vld [vmem:[#allocation13 + $0x58] sm:$0xff]
    %v726 = vld [vmem:[#allocation13 + $0x60] sm:$0xff]
    %v727 = vld [vmem:[#allocation13 + $0x68] sm:$0xff]
    %v728 = vld [vmem:[#allocation13 + $0x70] sm:$0xff]
    %v729 = vld [vmem:[#allocation13 + $0x78] sm:$0xff]
    %v730 = vld [vmem:[%s11] sm:$0x1]
    %v732 = vlaneseq
    %v733 = vshrl.u32 %v732, 7
    %v734 = vsub.s32 0, %v733
    %v735 = vrot.slane %v730, %v734
    %737 = vmatprep.subr.mxu0 0.0
    %738 = vmatpush1.msra.mxu0 %v714
    %739 = vmatprep.subr.mxu0 0.0
    %740 = vmatpush1.msra.mxu0 %v715
    %741 = vmatprep.subr.mxu0 0.0
    %742 = vmatpush1.msra.mxu0 %v716
    %743 = vmatprep.subr.mxu0 0.0
    %744 = vmatpush1.msra.mxu0 %v717
    %745 = vmatprep.subr.mxu0 0.0
    %746 = vmatpush1.msra.mxu0 %v718
    %747 = vmatprep.subr.mxu0 0.0
    %748 = vmatpush1.msra.mxu0 %v719
    %749 = vmatprep.subr.mxu0 0.0
    %750 = vmatpush1.msra.mxu0 %v720
    %751 = vmatprep.subr.mxu0 0.0
    %752 = vmatpush1.msra.mxu0 %v721
    %753 = vmatprep.subr.mxu0 0.0
    %754 = vmatpush1.msra.mxu0 %v722
    %755 = vmatprep.subr.mxu0 0.0
    %756 = vmatpush1.msra.mxu0 %v723
    %757 = vmatprep.subr.mxu0 0.0
    %758 = vmatpush1.msra.mxu0 %v724
    %759 = vmatprep.subr.mxu0 0.0
    %760 = vmatpush1.msra.mxu0 %v725
    %761 = vmatprep.subr.mxu0 0.0
    %762 = vmatpush1.msra.mxu0 %v726
    %763 = vmatprep.subr.mxu0 0.0
    %764 = vmatpush1.msra.mxu0 %v727
    %765 = vmatprep.subr.mxu0 0.0
    %766 = vmatpush1.msra.mxu0 %v728
    %767 = vmatprep.subr.mxu0 0.0
    %768 = vmatpush1.msra.mxu0 %v729
    %769 = vmatprep.subr.mxu0 0.0
    %770 = vmatpush1.msra.mxu0 0.0
    %771 = vmatprep.subr.mxu0 0.0
    %772 = vmatpush1.msra.mxu0 0.0
    %773 = vmatprep.subr.mxu0 0.0
    %774 = vmatpush1.msra.mxu0 0.0
    %775 = vmatprep.subr.mxu0 0.0
    %776 = vmatpush1.msra.mxu0 0.0
    %777 = vmatprep.subr.mxu0 0.0
    %778 = vmatpush1.msra.mxu0 0.0
    %779 = vmatprep.subr.mxu0 0.0
    %780 = vmatpush1.msra.mxu0 0.0
    %781 = vmatprep.subr.mxu0 0.0
    %782 = vmatpush1.msra.mxu0 0.0
    %783 = vmatprep.subr.mxu0 0.0
    %784 = vmatpush1.msra.mxu0 0.0
    %785 = vmatprep.subr.mxu0 0.0
    %786 = vmatpush1.msra.mxu0 0.0
    %787 = vmatprep.subr.mxu0 0.0
    %788 = vmatpush1.msra.mxu0 0.0
    %789 = vmatprep.subr.mxu0 0.0
    %790 = vmatpush1.msra.mxu0 0.0
    %791 = vmatprep.subr.mxu0 0.0
    %792 = vmatpush1.msra.mxu0 0.0
    %793 = vmatprep.subr.mxu0 0.0
    %794 = vmatpush1.msra.mxu0 0.0
    %795 = vmatprep.subr.mxu0 0.0
    %796 = vmatpush1.msra.mxu0 0.0
    %797 = vmatprep.subr.mxu0 0.0
    %798 = vmatpush1.msra.mxu0 0.0
    %799 = vmatprep.subr.mxu0 0.0
    %800 = vmatpush1.msra.mxu0 0.0
    %801 = vmatprep.mubr.f32.mxu0 0.0
    %802 = vmatmul.mubr.f32.gmra.mrb[0].mxu0 %v713
    %v803 = vpop.f32.mrb[0].mxu0
    %v804 = vadd.f32 %v735, %v803
    %v805 = vpop.f32.mrb[0].mxu0
    %806 = vdwg.mxu0
    %v807 = vmax.f32 %v804, 0.0
    %v808 = vld [vmem:[#allocation14] sm:$0xff]
    %v809 = vld [vmem:[#allocation14 + $0x8] sm:$0xff]
    %v810 = vld [vmem:[#allocation14 + $0x10] sm:$0xff]
    %v811 = vld [vmem:[#allocation14 + $0x18] sm:$0xff]
    %v812 = vld [vmem:[#allocation14 + $0x20] sm:$0xff]
    %v813 = vld [vmem:[#allocation14 + $0x28] sm:$0xff]
    %v814 = vld [vmem:[#allocation14 + $0x30] sm:$0xff]
    %v815 = vld [vmem:[#allocation14 + $0x38] sm:$0xff]
    %v816 = vld [vmem:[#allocation14 + $0x40] sm:$0xff]
    %v817 = vld [vmem:[#allocation14 + $0x48] sm:$0xff]
    %v818 = vld [vmem:[#allocation14 + $0x50] sm:$0xff]
    %v819 = vld [vmem:[#allocation14 + $0x58] sm:$0xff]
    %v820 = vld [vmem:[#allocation14 + $0x60] sm:$0xff]
    %v821 = vld [vmem:[#allocation14 + $0x68] sm:$0xff]
    %v822 = vld [vmem:[#allocation14 + $0x70] sm:$0xff]
    %v823 = vld [vmem:[#allocation14 + $0x78] sm:$0xff]
    %824 = vmatprep.subr.mxu0 0.0
    %825 = vmatpush1.msra.mxu0 %v808
    %826 = vmatprep.subr.mxu0 0.0
    %827 = vmatpush1.msra.mxu0 %v809
    %828 = vmatprep.subr.mxu0 0.0
    %829 = vmatpush1.msra.mxu0 %v810
    %830 = vmatprep.subr.mxu0 0.0
    %831 = vmatpush1.msra.mxu0 %v811
    %832 = vmatprep.subr.mxu0 0.0
    %833 = vmatpush1.msra.mxu0 %v812
    %834 = vmatprep.subr.mxu0 0.0
    %835 = vmatpush1.msra.mxu0 %v813
    %836 = vmatprep.subr.mxu0 0.0
    %837 = vmatpush1.msra.mxu0 %v814
    %838 = vmatprep.subr.mxu0 0.0
    %839 = vmatpush1.msra.mxu0 %v815
    %840 = vmatprep.subr.mxu0 0.0
    %841 = vmatpush1.msra.mxu0 %v816
    %842 = vmatprep.subr.mxu0 0.0
    %843 = vmatpush1.msra.mxu0 %v817
    %844 = vmatprep.subr.mxu0 0.0
    %845 = vmatpush1.msra.mxu0 %v818
    %846 = vmatprep.subr.mxu0 0.0
    %847 = vmatpush1.msra.mxu0 %v819
    %848 = vmatprep.subr.mxu0 0.0
    %849 = vmatpush1.msra.mxu0 %v820
    %850 = vmatprep.subr.mxu0 0.0
    %851 = vmatpush1.msra.mxu0 %v821
    %852 = vmatprep.subr.mxu0 0.0
    %853 = vmatpush1.msra.mxu0 %v822
    %854 = vmatprep.subr.mxu0 0.0
    %855 = vmatpush1.msra.mxu0 %v823
    %856 = vmatprep.subr.mxu0 0.0
    %857 = vmatpush1.msra.mxu0 0.0
    %858 = vmatprep.subr.mxu0 0.0
    %859 = vmatpush1.msra.mxu0 0.0
    %860 = vmatprep.subr.mxu0 0.0
    %861 = vmatpush1.msra.mxu0 0.0
    %862 = vmatprep.subr.mxu0 0.0
    %863 = vmatpush1.msra.mxu0 0.0
    %864 = vmatprep.subr.mxu0 0.0
    %865 = vmatpush1.msra.mxu0 0.0
    %866 = vmatprep.subr.mxu0 0.0
    %867 = vmatpush1.msra.mxu0 0.0
    %868 = vmatprep.subr.mxu0 0.0
    %869 = vmatpush1.msra.mxu0 0.0
    %870 = vmatprep.subr.mxu0 0.0
    %871 = vmatpush1.msra.mxu0 0.0
    %872 = vmatprep.subr.mxu0 0.0
    %873 = vmatpush1.msra.mxu0 0.0
    %874 = vmatprep.subr.mxu0 0.0
    %875 = vmatpush1.msra.mxu0 0.0
    %876 = vmatprep.subr.mxu0 0.0
    %877 = vmatpush1.msra.mxu0 0.0
    %878 = vmatprep.subr.mxu0 0.0
    %879 = vmatpush1.msra.mxu0 0.0
    %880 = vmatprep.subr.mxu0 0.0
    %881 = vmatpush1.msra.mxu0 0.0
    %882 = vmatprep.subr.mxu0 0.0
    %883 = vmatpush1.msra.mxu0 0.0
    %884 = vmatprep.subr.mxu0 0.0
    %885 = vmatpush1.msra.mxu0 0.0
    %886 = vmatprep.subr.mxu0 0.0
    %887 = vmatpush1.msra.mxu0 0.0
    %888 = vmatprep.mubr.f32.mxu0 0.0
    %889 = vmatmul.mubr.f32.gmra.mrb[0].mxu0 %v807
    %v890 = vpop.f32.mrb[0].mxu0
    %v891 = vadd.f32 0.0, %v890
    %v892 = vpop.f32.mrb[0].mxu0
    %893 = vdwg.mxu0
    %894 = vst [vmem:[#allocation19] sm:$0xff] %v891
    // Predicated region
    $region86: #{tpu_custom_call.1} parent=1 // pred_check
      _
    $region87: #{tpu_custom_call.1} parent=1 // pred_check_branch
      %896 = sbr.rel (0) target = $region89
    $region88: #{tpu_custom_call.1} parent=1 // pred_region
      %s898 = ssub.s32 128, 128
      %899 = vsyncadd [#allocation4], %s898
      %s901 = sshll.u32 [#allocation16], 4
      %s902 = int_to_ptr.vmem [resolvable:$true] %s901
      %904 = dma.vmem_to_hbm [thread:$0]  %s902, 128, %s13, [#allocation4]
    $region89: #{tpu_custom_call.1} parent=1 // pred_fallthru
      _
    // Predicated region
    $region90: #{tpu_custom_call.1} parent=1 // pred_check
      _
    $region91: #{tpu_custom_call.1} parent=1 // pred_check_branch
      %906 = sbr.rel (0) target = $region93
    $region92: #{tpu_custom_call.1} parent=1 // pred_region
      _
    $region93: #{tpu_custom_call.1} parent=1 // pred_fallthru
      _
    // Predicated region
    $region94: #{tpu_custom_call.1} parent=1 // pred_check
      _
    $region95: #{tpu_custom_call.1} parent=1 // pred_check_branch
      %908 = sbr.rel (0) target = $region97
    $region96: #{tpu_custom_call.1} parent=1 // pred_region
      %s910 = ssub.s32 256, 256
      %911 = vsyncadd [#allocation18], %s910
      %s913 = sshll.u32 [#allocation17], 4
      %s914 = int_to_ptr.vmem [resolvable:$true] %s913
      %916 = dma.vmem_to_hbm [thread:$0]  %s914, 256, %s15, [#allocation18]
    $region97: #{tpu_custom_call.1} parent=1 // pred_fallthru
      _
    // Predicated region
    $region98: #{tpu_custom_call.1} parent=1 // pred_check
      _
    $region99: #{tpu_custom_call.1} parent=1 // pred_check_branch
      %918 = sbr.rel (0) target = $region101
    $region100: #{tpu_custom_call.1} parent=1 // pred_region
      %s920 = ssub.s32 128, 128
      %921 = vsyncadd [#allocation18], %s920
      %s923 = sshll.u32 [#allocation19], 4
      %s924 = int_to_ptr.vmem [resolvable:$true] %s923
      %926 = dma.vmem_to_hbm [thread:$0]  %s924, 128, %s16, [#allocation18]
    $region101: #{tpu_custom_call.1} parent=1 // pred_fallthru
      _
    // Predicated region
    $region102: #{tpu_custom_call.1} parent=1 // pred_check
      _
    $region103: #{tpu_custom_call.1} parent=1 // pred_check_branch
      %928 = sbr.rel (0) target = $region105
    $region104: #{tpu_custom_call.1} parent=1 // pred_region
      %929 = dma.done [#allocation4], 128
    $region105: #{tpu_custom_call.1} parent=1 // pred_fallthru
      _
    // Predicated region
    $region106: #{tpu_custom_call.1} parent=1 // pred_check
      _
    $region107: #{tpu_custom_call.1} parent=1 // pred_check_branch
      %931 = sbr.rel (0) target = $region109
    $region108: #{tpu_custom_call.1} parent=1 // pred_region
      _
    $region109: #{tpu_custom_call.1} parent=1 // pred_fallthru
      _
    // Predicated region
    $region110: #{tpu_custom_call.1} parent=1 // pred_check
      _
    $region111: #{tpu_custom_call.1} parent=1 // pred_check_branch
      %933 = sbr.rel (0) target = $region113
    $region112: #{tpu_custom_call.1} parent=1 // pred_region
      %934 = dma.done [#allocation18], 256
    $region113: #{tpu_custom_call.1} parent=1 // pred_fallthru
      _
    // Predicated region
    $region114: #{tpu_custom_call.1} parent=1 // pred_check
      _
    $region115: #{tpu_custom_call.1} parent=1 // pred_check_branch
      %936 = sbr.rel (0) target = $region117
    $region116: #{tpu_custom_call.1} parent=1 // pred_region
      %937 = dma.done [#allocation18], 128
    $region117: #{tpu_custom_call.1} parent=1 // pred_fallthru
      _
    %938 = vsyncpa [#allocation3], 1
    %939 = vsyncpa [#allocation6], 1
    %940 = vsyncpa [#allocation9], 1
    %941 = vsyncpa [#allocation12], 1
    %942 = vsyncpa [#allocation15], 1
    %943 = vsyncpa [#allocation4], 1
    %944 = vsyncpa [#allocation18], 1

</llo_original>
